<compile_context>
chip_gen: v5e
topology: v5e:2x2
jax: 0.10.0
libtpu: 0.0.40
codegen_flags: <defaults>
</compile_context>

<pallas_src>
import functools
import math

import jax
import jax.numpy as jnp
from jax import lax
from jax.experimental import pallas as pl
from jax.experimental.pallas import tpu as pltpu


# Finite "minus infinity" for masking padded key columns (avoids NaNs from
# exp(-inf - (-inf)) in fully-masked corner cases).
_MASK_VALUE = -1e30


def _round_up(x: int, m: int) -> int:
    return ((x + m - 1) // m) * m


def _attn_single_block_kernel(q_ref, k_ref, v_ref, o_ref, *, n_k: int, tk: int):
    """All keys/values fit in one kv tile -> plain (non-online) softmax.

    q_ref: (1, tq, d_pad)   -- Q already pre-scaled by 1/sqrt(d)
    k_ref: (1, tk, d_pad)
    v_ref: (1, tk, v_pad)
    o_ref: (1, tq, v_pad)
    """
    q = q_ref[0]            # (tq, d_pad)
    k = k_ref[0]            # (tk, d_pad)
    v = v_ref[0]            # (tk, v_pad)

    # scores = Q @ K^T : contract last dims directly ('qd,kd->qk').
    s = lax.dot_general(q, k, (((1,), (1,)), ((), ())),
                        preferred_element_type=jnp.float32)   # (tq, tk)

    # Mask padded key columns (statically elided when no padding exists).
    if n_k % tk != 0:
        key_idx = lax.broadcasted_iota(jnp.int32, s.shape, 1)
        s = jnp.where(key_idx < n_k, s, _MASK_VALUE)

    m = jnp.max(s, axis=-1, keepdims=True)
    p = jnp.exp(s - m)                                        # (tq, tk)
    l = jnp.sum(p, axis=-1, keepdims=True)                    # (tq, 1)

    o = lax.dot_general(p.astype(v.dtype), v, (((1,), (0,)), ((), ())),
                        preferred_element_type=jnp.float32)   # (tq, v_pad)
    o_ref[0] = (o * pl.reciprocal(l, approx=True)).astype(o_ref.dtype)


def _flash_attn_kernel(q_ref, k_ref, v_ref, o_ref, m_sc, l_sc, acc_sc,
                       *, n_k: int, tk: int):
    """One (batch, q-tile) x kv-tile step of online-softmax attention.

    q_ref: (1, tq, d_pad)   -- Q already pre-scaled by 1/sqrt(d)
    k_ref: (1, tk, d_pad)
    v_ref: (1, tk, v_pad)
    o_ref: (1, tq, v_pad)
    m_sc:  (tq, 1) f32      running row max
    l_sc:  (tq, 1) f32      running softmax denominator
    acc_sc:(tq, v_pad) f32  running (unnormalized) output accumulator
    """
    kv = pl.program_id(2)

    @pl.when(kv == 0)
    def _():
        m_sc[...] = jnp.full_like(m_sc, -jnp.inf)
        l_sc[...] = jnp.zeros_like(l_sc)
        acc_sc[...] = jnp.zeros_like(acc_sc)

    q = q_ref[0]            # (tq, d_pad)
    k = k_ref[0]            # (tk, d_pad)
    v = v_ref[0]            # (tk, v_pad)

    s = lax.dot_general(q, k, (((1,), (1,)), ((), ())),
                        preferred_element_type=jnp.float32)   # (tq, tk)

    # Mask padded key columns.  n_k is static, so this branch (and the iota)
    # is only emitted when padding actually exists.
    if n_k % tk != 0:
        key_idx = kv * tk + lax.broadcasted_iota(jnp.int32, s.shape, 1)
        s = jnp.where(key_idx < n_k, s, _MASK_VALUE)

    # Online softmax update.
    m_prev = m_sc[...]
    m_new = jnp.maximum(m_prev, jnp.max(s, axis=-1, keepdims=True))
    alpha = jnp.exp(m_prev - m_new)                   # correction for old state
    p = jnp.exp(s - m_new)                            # (tq, tk)

    l_sc[...] = alpha * l_sc[...] + jnp.sum(p, axis=-1, keepdims=True)
    acc_sc[...] = alpha * acc_sc[...] + lax.dot_general(
        p.astype(v.dtype), v, (((1,), (0,)), ((), ())),
        preferred_element_type=jnp.float32)
    m_sc[...] = m_new

    @pl.when(kv == pl.num_programs(2) - 1)
    def _():
        # Final normalization only happens once per q tile -> EUP approx
        # reciprocal is effectively free here.
        inv_l = pl.reciprocal(l_sc[...], approx=True)
        o_ref[0] = (acc_sc[...] * inv_l).astype(o_ref.dtype)


def dot_product_attention(queries, keys, values, *, tq: int = 128, tk: int = 128):
    """Pallas implementation of DotProductAttention.forward (eval mode).

    queries: (bs, n_q, d), keys: (bs, n_k, d), values: (bs, n_k, v)
    returns: (bs, n_q, v)

    Tile-size guidance: tq=tk=128 is safe on v5e/v6e/v7x.  On v6e (128 MiB
    VMEM, 2x256x256 MXU) tq=tk=256 is typically better; on v7x size the
    working set against 64 MiB VMEM.  Tiles are automatically capped at the
    (8-aligned) sequence lengths for short sequences.
    """
    bs, n_q, d = queries.shape
    kb, n_k, d_k = keys.shape
    vb, n_v, v_dim = values.shape
    assert bs == kb == vb and d == d_k and n_k == n_v

    # Never tile wider than the (8-aligned) sequence lengths -- avoids padding
    # short sequences up to 128 rows of dead MXU work while keeping (8, 128)
    # block-shape legality (second-to-last dims stay multiples of 8).
    tq = min(tq, _round_up(n_q, 8))
    tk = min(tk, _round_up(n_k, 8))

    # Fold the 1/sqrt(d) scale into Q once (fuses with the pad below), instead
    # of re-scaling on every kv tile inside the kernel.
    q = queries * jnp.asarray(1.0 / math.sqrt(d), dtype=queries.dtype)

    # Lane-dense / MXU-friendly padding: feature dims to multiples of 128,
    # sequence dims up to a whole tile.  Padded Q rows are sliced off at the
    # end; padded K columns are masked in-kernel; padded d / v columns are
    # zeros and therefore inert in the matmuls.
    d_pad = _round_up(d, 128)
    v_pad = _round_up(v_dim, 128)
    n_q_pad = _round_up(n_q, tq)
    n_k_pad = _round_up(n_k, tk)

    q = jnp.pad(q, ((0, 0), (0, n_q_pad - n_q), (0, d_pad - d)))
    k = jnp.pad(keys, ((0, 0), (0, n_k_pad - n_k), (0, d_pad - d)))
    v = jnp.pad(values, ((0, 0), (0, n_k_pad - n_k), (0, v_pad - v_dim)))

    n_q_tiles = n_q_pad // tq
    n_k_tiles = n_k_pad // tk
    out_shape = jax.ShapeDtypeStruct((bs, n_q_pad, v_pad), queries.dtype)

    if n_k_tiles == 1:
        # Fast path: whole kv range in one tile -> no scratch, no kv grid axis,
        # no online-softmax rescale traffic.
        kernel = functools.partial(_attn_single_block_kernel, n_k=n_k, tk=tk)
        out_padded = pl.pallas_call(
            kernel,
            out_shape=out_shape,
            grid_spec=pltpu.PrefetchScalarGridSpec(
                num_scalar_prefetch=0,
                grid=(bs, n_q_tiles),
                in_specs=[
                    pl.BlockSpec((1, tq, d_pad), lambda b, qi: (b, qi, 0)),
                    pl.BlockSpec((1, tk, d_pad), lambda b, qi: (b, 0, 0)),
                    pl.BlockSpec((1, tk, v_pad), lambda b, qi: (b, 0, 0)),
                ],
                out_specs=pl.BlockSpec((1, tq, v_pad), lambda b, qi: (b, qi, 0)),
            ),
            compiler_params=pltpu.CompilerParams(
                dimension_semantics=("parallel", "parallel"),
            ),
        )(q, k, v)
    else:
        kernel = functools.partial(_flash_attn_kernel, n_k=n_k, tk=tk)
        out_padded = pl.pallas_call(
            kernel,
            out_shape=out_shape,
            grid_spec=pltpu.PrefetchScalarGridSpec(
                num_scalar_prefetch=0,
                grid=(bs, n_q_tiles, n_k_tiles),
                in_specs=[
                    pl.BlockSpec((1, tq, d_pad), lambda b, qi, ki: (b, qi, 0)),
                    pl.BlockSpec((1, tk, d_pad), lambda b, qi, ki: (b, ki, 0)),
                    pl.BlockSpec((1, tk, v_pad), lambda b, qi, ki: (b, ki, 0)),
                ],
                out_specs=pl.BlockSpec((1, tq, v_pad), lambda b, qi, ki: (b, qi, 0)),
                scratch_shapes=[
                    pltpu.VMEM((tq, 1), jnp.float32),      # running max m
                    pltpu.VMEM((tq, 1), jnp.float32),      # running denom l
                    pltpu.VMEM((tq, v_pad), jnp.float32),  # output accumulator
                ],
            ),
            compiler_params=pltpu.CompilerParams(
                # batch and q-tile axes are independent (megacore-shardable);
                # the kv axis carries the online-softmax reduction.
                dimension_semantics=("parallel", "parallel", "arbitrary"),
            ),
        )(q, k, v)

    return out_padded[:, :n_q, :v_dim]


def _reference(queries, keys, values):
    d = queries.shape[-1]
    scores = jnp.einsum("bqd,bkd->bqk", queries, keys) / math.sqrt(d)
    attn = jax.nn.softmax(scores, axis=-1)
    return jnp.einsum("bqk,bkv->bqv", attn, values)


if __name__ == "__main__":
    key = jax.random.PRNGKey(0)
    kq, kk, kv = jax.random.split(key, 3)

    bs, n_q, n_k, d, v_dim = 2, 8, 8, 32, 32
    queries = jax.random.normal(kq, (bs, n_q, d), dtype=jnp.float32)
    keys = jax.random.normal(kk, (bs, n_k, d), dtype=jnp.float32)
    values = jax.random.normal(kv, (bs, n_k, v_dim), dtype=jnp.float32)

    out = dot_product_attention(queries, keys, values)
    out = jax.block_until_ready(out)

    ref = _reference(queries, keys, values)
    assert out.shape == (bs, n_q, v_dim)
    # Tolerance accounts for the EUP approximate reciprocal used in the
    # softmax normalization (sub-1e-3 relative error on O(1) outputs).
    assert jnp.allclose(out, ref, atol=1e-2, rtol=1e-2), "mismatch vs reference"

    # Also exercise the multi-kv-tile (flash) path on a longer sequence.
    n_q2, n_k2 = 200, 300
    q2 = jax.random.normal(kq, (bs, n_q2, d), dtype=jnp.float32)
    k2 = jax.random.normal(kk, (bs, n_k2, d), dtype=jnp.float32)
    v2 = jax.random.normal(kv, (bs, n_k2, v_dim), dtype=jnp.float32)
    out2 = jax.block_until_ready(dot_product_attention(q2, k2, v2))
    ref2 = _reference(q2, k2, v2)
    assert out2.shape == (bs, n_q2, v_dim)
    assert jnp.allclose(out2, ref2, atol=1e-2, rtol=1e-2), "mismatch (flash path)"

    print("KERNEL_OK")
</pallas_src>

<mosaic_0001>
module attributes {stable_mosaic.version = 11 : i64} {
  func.func @_attn_single_block_kernel(%arg0: i32, %arg1: i32, %arg2: memref<1x8x128xf32, #tpu.memory_space<vmem>>, %arg3: memref<1x8x128xf32, #tpu.memory_space<vmem>>, %arg4: memref<1x8x128xf32, #tpu.memory_space<vmem>>, %arg5: memref<1x8x128xf32, #tpu.memory_space<vmem>>) attributes {dimension_semantics = [#tpu.dimension_semantics<parallel>, #tpu.dimension_semantics<parallel>], iteration_bounds = array<i64: 2, 1>, scalar_prefetch = 0 : i64, scratch_operands = 0 : i64, tpu.core_type = #tpu.core_type<tc>, window_params = [{transform_indices = @transform_0, window_bounds = array<i64: 1, 8, 128>}, {transform_indices = @transform_1, window_bounds = array<i64: 1, 8, 128>}, {transform_indices = @transform_2, window_bounds = array<i64: 1, 8, 128>}, {transform_indices = @transform_3, window_bounds = array<i64: 1, 8, 128>}]} {
    %c0 = arith.constant 0 : index
    %c0_0 = arith.constant 0 : index
    %c0_1 = arith.constant 0 : index
    %0 = vector.load %arg2[%c0, %c0_0, %c0_1] : memref<1x8x128xf32, #tpu.memory_space<vmem>>, vector<1x8x128xf32>
    %1 = vector.shape_cast %0 : vector<1x8x128xf32> to vector<8x128xf32>
    %c0_2 = arith.constant 0 : index
    %c0_3 = arith.constant 0 : index
    %c0_4 = arith.constant 0 : index
    %2 = vector.load %arg3[%c0_2, %c0_3, %c0_4] : memref<1x8x128xf32, #tpu.memory_space<vmem>>, vector<1x8x128xf32>
    %3 = vector.shape_cast %2 : vector<1x8x128xf32> to vector<8x128xf32>
    %c0_5 = arith.constant 0 : index
    %c0_6 = arith.constant 0 : index
    %c0_7 = arith.constant 0 : index
    %4 = vector.load %arg4[%c0_5, %c0_6, %c0_7] : memref<1x8x128xf32, #tpu.memory_space<vmem>>, vector<1x8x128xf32>
    %5 = vector.shape_cast %4 : vector<1x8x128xf32> to vector<8x128xf32>
    %cst = arith.constant dense<0.000000e+00> : vector<8x8xf32>
    %6 = tpu.matmul %1, %3, %cst {dimension_numbers = #tpu.dot_dimension_numbers<[1], [1], [0], [0], [0, 0, 1, 0], [], []>} : vector<8x128xf32>, vector<8x128xf32>, vector<8x8xf32> -> vector<8x8xf32>
    %cst_8 = arith.constant dense<0xFF800000> : vector<8xf32>
    %7 = vector.multi_reduction <maximumf>, %6, %cst_8 [1] : vector<8x8xf32> to vector<8xf32>
    %8 = vector.shape_cast %7 : vector<8xf32> to vector<8x1xf32>
    %9 = vector.broadcast %8 : vector<8x1xf32> to vector<8x8xf32>
    %10 = arith.subf %6, %9 : vector<8x8xf32>
    %11 = math.exp %10 : vector<8x8xf32>
    %cst_9 = arith.constant dense<0.000000e+00> : vector<8xf32>
    %12 = vector.multi_reduction <add>, %11, %cst_9 [1] : vector<8x8xf32> to vector<8xf32>
    %13 = vector.shape_cast %12 : vector<8xf32> to vector<8x1xf32>
    %cst_10 = arith.constant dense<0.000000e+00> : vector<8x128xf32>
    %14 = tpu.matmul %11, %5, %cst_10 {dimension_numbers = #tpu.dot_dimension_numbers<[1], [0], [0], [1], [0, 0, 1, 1], [], []>} : vector<8x8xf32>, vector<8x128xf32>, vector<8x128xf32> -> vector<8x128xf32>
    %15 = tpu.reciprocal %13 {approx = true} : vector<8x1xf32> -> vector<8x1xf32>
    %16 = vector.broadcast %15 : vector<8x1xf32> to vector<8x128xf32>
    %17 = arith.mulf %14, %16 : vector<8x128xf32>
    %c0_11 = arith.constant 0 : index
    %c0_12 = arith.constant 0 : index
    %c0_13 = arith.constant 0 : index
    %18 = vector.load %arg5[%c0_11, %c0_12, %c0_13] : memref<1x8x128xf32, #tpu.memory_space<vmem>>, vector<1x8x128xf32>
    %19 = vector.shape_cast %18 : vector<1x8x128xf32> to vector<8x128xf32>
    %20 = vector.shape_cast %17 : vector<8x128xf32> to vector<1x8x128xf32>
    tpu.vector_store %arg5[%c0_11, %c0_12, %c0_13], %20 {strides = array<i32>} : memref<1x8x128xf32, #tpu.memory_space<vmem>>, vector<1x8x128xf32>,
    return
  }
  func.func @transform_0(%arg0: i32, %arg1: i32) -> (i32, i32, i32) {
    %c0_i32 = arith.constant 0 : i32
    %c0_i32_0 = arith.constant 0 : i32
    return %arg0, %arg1, %c0_i32 : i32, i32, i32
  }
  func.func @transform_1(%arg0: i32, %arg1: i32) -> (i32, i32, i32) {
    %c0_i32 = arith.constant 0 : i32
    %c0_i32_0 = arith.constant 0 : i32
    %c0_i32_1 = arith.constant 0 : i32
    return %arg0, %c0_i32, %c0_i32_0 : i32, i32, i32
  }
  func.func @transform_2(%arg0: i32, %arg1: i32) -> (i32, i32, i32) {
    %c0_i32 = arith.constant 0 : i32
    %c0_i32_0 = arith.constant 0 : i32
    %c0_i32_1 = arith.constant 0 : i32
    return %arg0, %c0_i32, %c0_i32_0 : i32, i32, i32
  }
  func.func @transform_3(%arg0: i32, %arg1: i32) -> (i32, i32, i32) {
    %c0_i32 = arith.constant 0 : i32
    %c0_i32_0 = arith.constant 0 : i32
    return %arg0, %arg1, %c0_i32 : i32, i32, i32
  }
}

</mosaic_0001>

<llo_original>
// kernel: tpu_custom_call.1
$region0: #{tpu_custom_call.1}
  #allocation0 [shape = 'u32[]', space=smem, size = 0x4, offset = 0x4, fixed_abs, tag = 'smem constant byte address 0x4 - core index']
  #allocation1 [shape = 'u32[72,128]{1,0:T(1,128)}', space=vmem, size = 0x9000, scoped, tag = 'internal scratch']
  %s0 = inlined_call_operand.hbm [shape: f32[2,8,128], index: 0, kind: input, shape index: {}]
  %s1 = inlined_call_operand.hbm [shape: f32[2,8,128], index: 1, kind: input, shape index: {}]
  %s2 = inlined_call_operand.hbm [shape: f32[2,8,128], index: 2, kind: input, shape index: {}]
  %s3 = inlined_call_operand.hbm [shape: f32[2,8,128], index: 3, kind: output, shape index: {}]
  %s4 = sld [smem:[#allocation0]]
  $region57: #{tpu_custom_call.1} parent=0
    _
  %s6 = ssub.s32 1, %s4
  %s7 = scalar_select 0, %s6, %s4
  $region1: #{tpu_custom_call.1} parent=0
    #allocation2 [shape = 'u8[8192]{0}', space=vmem, size = 0x2000, scoped, tag = 'input window, operand 0']
    #allocation3 [shape = 's32[2]{0}', space=sflag, size = 0x8, scoped, tag = 'scoped memory for tpu_custom_call.1']
    #allocation4 [shape = 's32[2]{0}', space=sflag, size = 0x8, scoped, tag = 'scoped memory for tpu_custom_call.1']
    #allocation5 [shape = 'u8[8192]{0}', space=vmem, size = 0x2000, scoped, tag = 'input window, operand 1']
    #allocation6 [shape = 's32[2]{0}', space=sflag, size = 0x8, scoped, tag = 'scoped memory for tpu_custom_call.1']
    #allocation7 [shape = 'u8[8192]{0}', space=vmem, size = 0x2000, scoped, tag = 'input window, operand 2']
    #allocation8 [shape = 'u8[8192]{0}', space=vmem, size = 0x2000, scoped, tag = 'output window, operand 0']
    %8 = vsyncpa [#allocation3], 0
    %s9 = scalar_lea.sflag [#allocation3], 1
    %10 = vsyncpa %s9, 0
    %11 = vsyncpa [#allocation6], 0
    %s12 = scalar_lea.sflag [#allocation6], 1
    %13 = vsyncpa %s12, 0
    %14 = vsyncpa [#allocation4], 0
    %s15 = scalar_lea.sflag [#allocation4], 1
    %16 = vsyncpa %s15, 0
    loop: start=0, step=1, limit=4
    $region2: #{tpu_custom_call.1} parent=1 // loop_pre_header
      _
    $region3: #{tpu_custom_call.1} parent=1 // loop_header
      %s18 = sphi 0, %s22
      %p19 = scmp.ge.s32.totalorder %s18, 4
      %s25 = sphi 0, %s37
      %s26 = sphi 0, %s33
      %s27 = sphi 0, %s25
      %s28 = sphi 0, %s26
      %s29 = sphi 0, %s27
      %s30 = sphi 0, %s28
      %s42 = sphi 0, %s44
      %s45 = sphi 0, %s42
      %s46 = sphi 0, %s45
      %s62 = sphi 0, %s46
      %s68 = sphi 0, %s70
      %s71 = sphi 0, %s68
      %s72 = sphi 0, %s71
      %s88 = sphi 0, %s72
      %s94 = sphi 0, %s96
      %s97 = sphi 0, %s94
      %s98 = sphi 0, %s97
      %s114 = sphi 0, %s98
      %s122 = sphi 0, %s124
      %s125 = sphi 0, %s122
      %s126 = sphi 0, %s125
      %s142 = sphi 0, %s126
    $region4: #{tpu_custom_call.1} parent=1 // loop_header_branch
      %21 = sbr.rel (%p19) target = $region8
    $region5: #{tpu_custom_call.1} parent=1 // loop_body
      %s23 = ssub.s32 %s18, 1
      %s24 = ssub.s32 %s18, 2
      %s31 = sadd.s32 1, %s26
      %p32 = scmp.ge.s32.totalorder %s31, 1
      %s33 = scalar_select %p32, 0, %s31
      %s34 = sadd.s32 1, %s25
      %s35 = scalar_select %p32, %s34, %s25
      %p36 = scmp.ge.s32.totalorder %s35, 2
      %s37 = scalar_select %p36, 0, %s35
      %s38 = ssub.s32 %s25, %s37
      %s39 = ssub.s32 %s26, %s33
      %s40 = sor.u32 %s38, %s39
      %p41 = scmp.eq.s32.totalorder %s40, 0
      %s43 = sadd.s32 %s42, 1
      %s44 = scalar_select %p41, %s42, %s43
      %p47 = pneg %p41
      %p48 = scmp.eq.s32.totalorder %s18, 1
      %p49 = por %p47, %p48
      %p50 = scmp.ne.s32.totalorder %s42, %s45
      %p51 = scmp.eq.s32.totalorder %s18, 0
      %p52 = por %p50, %p51
      %p53 = scmp.ne.s32.totalorder %s42, %s45
      %p54 = scmp.eq.s32.totalorder %s23, 1
      %p55 = por %p53, %p54
      %p56 = scmp.ne.s32.totalorder %s45, %s46
      %p57 = scmp.eq.s32.totalorder %s23, 0
      %p58 = por %p56, %p57
      %p59 = scmp.ne.s32.totalorder %s45, %s46
      %p60 = scmp.eq.s32.totalorder %s24, 1
      %p61 = por %p59, %p60
      %p63 = scmp.ne.s32.totalorder %s46, %s62
      %p64 = scmp.eq.s32.totalorder %s24, 0
      %p65 = por %p63, %p64
      %s66 = ssub.s32 %s25, %s37
      %p67 = scmp.eq.s32.totalorder %s66, 0
      %s69 = sadd.s32 %s68, 1
      %s70 = scalar_select %p67, %s68, %s69
      %p73 = pneg %p67
      %p74 = scmp.eq.s32.totalorder %s18, 1
      %p75 = por %p73, %p74
      %p76 = scmp.ne.s32.totalorder %s68, %s71
      %p77 = scmp.eq.s32.totalorder %s18, 0
      %p78 = por %p76, %p77
      %p79 = scmp.ne.s32.totalorder %s68, %s71
      %p80 = scmp.eq.s32.totalorder %s23, 1
      %p81 = por %p79, %p80
      %p82 = scmp.ne.s32.totalorder %s71, %s72
      %p83 = scmp.eq.s32.totalorder %s23, 0
      %p84 = por %p82, %p83
      %p85 = scmp.ne.s32.totalorder %s71, %s72
      %p86 = scmp.eq.s32.totalorder %s24, 1
      %p87 = por %p85, %p86
      %p89 = scmp.ne.s32.totalorder %s72, %s88
      %p90 = scmp.eq.s32.totalorder %s24, 0
      %p91 = por %p89, %p90
      %s92 = ssub.s32 %s25, %s37
      %p93 = scmp.eq.s32.totalorder %s92, 0
      %s95 = sadd.s32 %s94, 1
      %s96 = scalar_select %p93, %s94, %s95
      %p99 = pneg %p93
      %p100 = scmp.eq.s32.totalorder %s18, 1
      %p101 = por %p99, %p100
      %p102 = scmp.ne.s32.totalorder %s94, %s97
      %p103 = scmp.eq.s32.totalorder %s18, 0
      %p104 = por %p102, %p103
      %p105 = scmp.ne.s32.totalorder %s94, %s97
      %p106 = scmp.eq.s32.totalorder %s23, 1
      %p107 = por %p105, %p106
      %p108 = scmp.ne.s32.totalorder %s97, %s98
      %p109 = scmp.eq.s32.totalorder %s23, 0
      %p110 = por %p108, %p109
      %p111 = scmp.ne.s32.totalorder %s97, %s98
      %p112 = scmp.eq.s32.totalorder %s24, 1
      %p113 = por %p111, %p112
      %p115 = scmp.ne.s32.totalorder %s98, %s114
      %p116 = scmp.eq.s32.totalorder %s24, 0
      %p117 = por %p115, %p116
      %s118 = ssub.s32 %s25, %s37
      %s119 = ssub.s32 %s26, %s33
      %s120 = sor.u32 %s118, %s119
      %p121 = scmp.eq.s32.totalorder %s120, 0
      %s123 = sadd.s32 %s122, 1
      %s124 = scalar_select %p121, %s122, %s123
      %p127 = pneg %p121
      %p128 = scmp.eq.s32.totalorder %s18, 1
      %p129 = por %p127, %p128
      %p130 = scmp.ne.s32.totalorder %s122, %s125
      %p131 = scmp.eq.s32.totalorder %s18, 0
      %p132 = por %p130, %p131
      %p133 = scmp.ne.s32.totalorder %s122, %s125
      %p134 = scmp.eq.s32.totalorder %s23, 1
      %p135 = por %p133, %p134
      %p136 = scmp.ne.s32.totalorder %s125, %s126
      %p137 = scmp.eq.s32.totalorder %s23, 0
      %p138 = por %p136, %p137
      %p139 = scmp.ne.s32.totalorder %s125, %s126
      %p140 = scmp.eq.s32.totalorder %s24, 1
      %p141 = por %p139, %p140
      %p143 = scmp.ne.s32.totalorder %s126, %s142
      %p144 = scmp.eq.s32.totalorder %s24, 0
      %p145 = por %p143, %p144
      %p146 = scmp.le.s32.totalorder 1, %s18
      %p147 = scmp.lt.s32.totalorder %s18, 3
      %p148 = pnand %p146, %p147
      %p149 = pneg %p148
      // Predicated region
      $region9: #{tpu_custom_call.1} parent=5 // pred_check
        _
      $region10: #{tpu_custom_call.1} parent=5 // pred_check_branch
        %151 = sbr.rel (%p148) target = $region12
      $region11: #{tpu_custom_call.1} parent=5 // pred_region
        %s152 = ssub.s32 %s18, 1
      $region12: #{tpu_custom_call.1} parent=5 // pred_fallthru
        _
      %p153 = scmp.lt.s32.totalorder %s18, 2
      // Predicated region
      $region13: #{tpu_custom_call.1} parent=5 // pred_check
        %p154 = pneg %p153
      $region14: #{tpu_custom_call.1} parent=5 // pred_check_branch
        %156 = sbr.rel (%p154) target = $region16
      $region15: #{tpu_custom_call.1} parent=5 // pred_region
        // Predicated region
        $region17: #{tpu_custom_call.1} parent=15 // pred_check
          %p157 = pneg %p52
        $region18: #{tpu_custom_call.1} parent=15 // pred_check_branch
          %159 = sbr.rel (%p157) target = $region20
        $region19: #{tpu_custom_call.1} parent=15 // pred_region
          %s160 = sand.u32 %s42, 1
          %s161 = scalar_lea.sflag [#allocation3], %s160
          %s162 = sand.u32 %s42, 1
          %s163 = smul.addr %s162, 8
          %s164 = scalar_lea.vmem [#allocation2], %s163
          %166 = vsyncadd %s161, 0
          %s167 = sadd.s32 %s26, %s25
          %s168 = smul.addr %s167, 8
          %s169 = scalar_lea.hbm %s0, %s168
          %s171 = sshll.u32 %s169, 4
          %s172 = int_to_ptr.hbm [resolvable:$true] %s171
          %s173 = sshll.u32 %s164, 4
          %s174 = int_to_ptr.vmem [resolvable:$true] %s173
          %176 = dma.hbm_to_vmem [thread:$0]  %s172, 128, %s174, %s161
        $region20: #{tpu_custom_call.1} parent=15 // pred_fallthru
          _
        // Predicated region
        $region21: #{tpu_custom_call.1} parent=15 // pred_check
          %p177 = pneg %p78
        $region22: #{tpu_custom_call.1} parent=15 // pred_check_branch
          %179 = sbr.rel (%p177) target = $region24
        $region23: #{tpu_custom_call.1} parent=15 // pred_region
          %s180 = sand.u32 %s18, 1
          %s181 = scalar_lea.sflag [#allocation6], %s180
          %s182 = sand.u32 %s68, 1
          %s183 = smul.addr %s182, 8
          %s184 = scalar_lea.vmem [#allocation5], %s183
          %186 = vsyncadd %s181, 0
          %s187 = smul.addr %s25, 8
          %s188 = scalar_lea.hbm %s1, %s187
          %s190 = sshll.u32 %s188, 4
          %s191 = int_to_ptr.hbm [resolvable:$true] %s190
          %s192 = sshll.u32 %s184, 4
          %s193 = int_to_ptr.vmem [resolvable:$true] %s192
          %195 = dma.hbm_to_vmem [thread:$0]  %s191, 128, %s193, %s181
        $region24: #{tpu_custom_call.1} parent=15 // pred_fallthru
          _
        // Predicated region
        $region25: #{tpu_custom_call.1} parent=15 // pred_check
          %p196 = pneg %p104
        $region26: #{tpu_custom_call.1} parent=15 // pred_check_branch
          %198 = sbr.rel (%p196) target = $region28
        $region27: #{tpu_custom_call.1} parent=15 // pred_region
          %s199 = sand.u32 %s18, 1
          %s200 = scalar_lea.sflag [#allocation6], %s199
          %s201 = sand.u32 %s94, 1
          %s202 = smul.addr %s201, 8
          %s203 = scalar_lea.vmem [#allocation7], %s202
          %205 = vsyncadd %s200, 0
          %s206 = smul.addr %s25, 8
          %s207 = scalar_lea.hbm %s2, %s206
          %s209 = sshll.u32 %s207, 4
          %s210 = int_to_ptr.hbm [resolvable:$true] %s209
          %s211 = sshll.u32 %s203, 4
          %s212 = int_to_ptr.vmem [resolvable:$true] %s211
          %214 = dma.hbm_to_vmem [thread:$0]  %s210, 128, %s212, %s200
        $region28: #{tpu_custom_call.1} parent=15 // pred_fallthru
          _
      $region16: #{tpu_custom_call.1} parent=5 // pred_fallthru
        _
      %p215 = scmp.le.s32.totalorder 1, %s18
      %p216 = scmp.lt.s32.totalorder %s18, 3
      %p217 = pnand %p215, %p216
      %p218 = pneg %p217
      // Predicated region
      $region29: #{tpu_custom_call.1} parent=5 // pred_check
        _
      $region30: #{tpu_custom_call.1} parent=5 // pred_check_branch
        %220 = sbr.rel (%p217) target = $region32
      $region31: #{tpu_custom_call.1} parent=5 // pred_region
        %s221 = ssub.s32 %s18, 1
        %s222 = sand.u32 %s45, 1
        %s223 = scalar_lea.sflag [#allocation3], %s222
        %s224 = sand.u32 %s45, 1
        %s225 = smul.addr %s224, 8
        %s226 = scalar_lea.vmem [#allocation2], %s225
        // Predicated region
        $region33: #{tpu_custom_call.1} parent=31 // pred_check
          %p227 = pneg %p58
        $region34: #{tpu_custom_call.1} parent=31 // pred_check_branch
          %229 = sbr.rel (%p227) target = $region36
        $region35: #{tpu_custom_call.1} parent=31 // pred_region
          %231 = dma.done %s223, 128
        $region36: #{tpu_custom_call.1} parent=31 // pred_fallthru
          _
        %s232 = sand.u32 %s23, 1
        %s233 = scalar_lea.sflag [#allocation6], %s232
        %s234 = sand.u32 %s71, 1
        %s235 = smul.addr %s234, 8
        %s236 = scalar_lea.vmem [#allocation5], %s235
        // Predicated region
        $region37: #{tpu_custom_call.1} parent=31 // pred_check
          %p237 = pneg %p84
        $region38: #{tpu_custom_call.1} parent=31 // pred_check_branch
          %239 = sbr.rel (%p237) target = $region40
        $region39: #{tpu_custom_call.1} parent=31 // pred_region
          %241 = dma.done %s233, 128
        $region40: #{tpu_custom_call.1} parent=31 // pred_fallthru
          _
        %s242 = sand.u32 %s23, 1
        %s243 = scalar_lea.sflag [#allocation6], %s242
        %s244 = sand.u32 %s97, 1
        %s245 = smul.addr %s244, 8
        %s246 = scalar_lea.vmem [#allocation7], %s245
        // Predicated region
        $region41: #{tpu_custom_call.1} parent=31 // pred_check
          %p247 = pneg %p110
        $region42: #{tpu_custom_call.1} parent=31 // pred_check_branch
          %249 = sbr.rel (%p247) target = $region44
        $region43: #{tpu_custom_call.1} parent=31 // pred_region
          %251 = dma.done %s243, 128
        $region44: #{tpu_custom_call.1} parent=31 // pred_fallthru
          _
        %s252 = sand.u32 %s45, 1
        %s253 = scalar_lea.sflag [#allocation3], %s252
        %s254 = sand.u32 %s45, 1
        %s255 = smul.addr %s254, 8
        %s256 = scalar_lea.vmem [#allocation2], %s255
        %p257 = pneg %p58
        %p258 = pneg %p55
        %s259 = sand.u32 %s23, 1
        %s260 = scalar_lea.sflag [#allocation6], %s259
        %s261 = sand.u32 %s71, 1
        %s262 = smul.addr %s261, 8
        %s263 = scalar_lea.vmem [#allocation5], %s262
        %p264 = pneg %p84
        %p265 = pneg %p81
        %s266 = sand.u32 %s23, 1
        %s267 = scalar_lea.sflag [#allocation6], %s266
        %s268 = sand.u32 %s97, 1
        %s269 = smul.addr %s268, 8
        %s270 = scalar_lea.vmem [#allocation7], %s269
        %p271 = pneg %p110
        %p272 = pneg %p107
        %p273 = pneg %p138
        %p274 = pneg %p135
        %s275 = sand.u32 %s125, 1
        %s276 = scalar_lea.sflag [#allocation4], %s275
        %s277 = sand.u32 %s125, 1
        %s278 = smul.addr %s277, 8
        %s279 = scalar_lea.vmem [#allocation8], %s278
        %v280 = vld [vmem:[%s226] sm:$0xff]
        %v281 = vld [vmem:[%s236] sm:$0xff]
        %v282 = vld [vmem:[%s246] sm:$0xff]
        %283 = vmatpush.xpose.msra.mxu0 0.0
        %284 = vmatpush.xpose.msra.mxu0 0.0
        %285 = vmatpush.xpose.msra.mxu0 0.0
        %286 = vmatpush.xpose.msra.mxu0 0.0
        %287 = vmatpush.xpose.msra.mxu0 0.0
        %288 = vmatpush.xpose.msra.mxu0 0.0
        %289 = vmatpush.xpose.msra.mxu0 0.0
        %290 = vmatpush.xpose.msra.mxu0 0.0
        %291 = vmatpush.xpose.msra.mxu0 0.0
        %292 = vmatpush.xpose.msra.mxu0 0.0
        %293 = vmatpush.xpose.msra.mxu0 0.0
        %294 = vmatpush.xpose.msra.mxu0 0.0
        %295 = vmatpush.xpose.msra.mxu0 0.0
        %296 = vmatpush.xpose.msra.mxu0 0.0
        %297 = vmatpush.xpose.msra.mxu0 0.0
        %298 = vmatpush.xpose.msra.mxu0 %v281
        %299 = vmatmul.f32.gmra.mxu0 %v280
        %v300 = vpop.f32.mrf.mxu0
        %v301 = vadd.f32 0.0, %v300
        %302 = vdwg.mxu0
        %vm303 = vcmask 64512
        %v304 = vsel %vm303, %v301, -inf
        %305 = vmax.xlane.f32.xlu0 %v304
        %v306 = vpop.xlane.xlu0 %305
        %v307 = vsub.f32 %v301, %v306
        %v308 = vmul.f32 %v307, 1.442695
        %v309 = vpow.pop %v308
        %v310 = vsel %vm303, %v309, 0.0
        %311 = vadd.xlane.f32.xlu0 %v310
        %v312 = vpop.xlane.xlu0 %311
        %v314 = vsel %vm303, %v309, 0
        %316 = vmatpush.msra.mxu0 0.0
        %317 = vmatpush.msra.mxu0 0.0
        %318 = vmatpush.msra.mxu0 0.0
        %319 = vmatpush.msra.mxu0 0.0
        %320 = vmatpush.msra.mxu0 0.0
        %321 = vmatpush.msra.mxu0 0.0
        %322 = vmatpush.msra.mxu0 0.0
        %323 = vmatpush.msra.mxu0 0.0
        %324 = vmatpush.msra.mxu0 0.0
        %325 = vmatpush.msra.mxu0 0.0
        %326 = vmatpush.msra.mxu0 0.0
        %327 = vmatpush.msra.mxu0 0.0
        %328 = vmatpush.msra.mxu0 0.0
        %329 = vmatpush.msra.mxu0 0.0
        %330 = vmatpush.msra.mxu0 0.0
        %331 = vmatpush.msra.mxu0 %v282
        %332 = vmatmul.f32.gmra.mxu0 %v314
        %v333 = vpop.f32.mrf.mxu0
        %v334 = vadd.f32 0.0, %v333
        %335 = vdwg.mxu0
        %v336 = vrcp.pop %v312
        %v337 = vmul.f32 %v334, %v336
        %338 = vst [vmem:[%s279] sm:$0xff] %v337
        %s339 = sand.u32 %s125, 1
        %s340 = scalar_lea.sflag [#allocation4], %s339
        %s341 = sand.u32 %s125, 1
        %s342 = smul.addr %s341, 8
        %s343 = scalar_lea.vmem [#allocation8], %s342
        // Predicated region
        $region45: #{tpu_custom_call.1} parent=31 // pred_check
          %p344 = pneg %p135
        $region46: #{tpu_custom_call.1} parent=31 // pred_check_branch
          %346 = sbr.rel (%p344) target = $region48
        $region47: #{tpu_custom_call.1} parent=31 // pred_region
          %348 = vsyncadd %s340, 0
          %s349 = sadd.s32 %s28, %s27
          %s350 = smul.addr %s349, 8
          %s351 = scalar_lea.hbm %s3, %s350
          %s353 = sshll.u32 %s343, 4
          %s354 = int_to_ptr.vmem [resolvable:$true] %s353
          %s355 = sshll.u32 %s351, 4
          %s356 = int_to_ptr.hbm [resolvable:$true] %s355
          %358 = dma.vmem_to_hbm [thread:$0]  %s354, 128, %s356, %s340
        $region48: #{tpu_custom_call.1} parent=31 // pred_fallthru
          _
      $region32: #{tpu_custom_call.1} parent=5 // pred_fallthru
        _
      %p359 = scmp.le.s32.totalorder 2, %s18
      // Predicated region
      $region49: #{tpu_custom_call.1} parent=5 // pred_check
        %p360 = pneg %p359
      $region50: #{tpu_custom_call.1} parent=5 // pred_check_branch
        %362 = sbr.rel (%p360) target = $region52
      $region51: #{tpu_custom_call.1} parent=5 // pred_region
        %s363 = ssub.s32 %s18, 2
        // Predicated region
        $region53: #{tpu_custom_call.1} parent=51 // pred_check
          %p364 = pneg %p141
        $region54: #{tpu_custom_call.1} parent=51 // pred_check_branch
          %366 = sbr.rel (%p364) target = $region56
        $region55: #{tpu_custom_call.1} parent=51 // pred_region
          %s367 = sand.u32 %s126, 1
          %s368 = scalar_lea.sflag [#allocation4], %s367
          %s369 = sand.u32 %s126, 1
          %s370 = smul.addr %s369, 8
          %s371 = scalar_lea.vmem [#allocation8], %s370
          %373 = dma.done %s368, 128
        $region56: #{tpu_custom_call.1} parent=51 // pred_fallthru
          _
      $region52: #{tpu_custom_call.1} parent=5 // pred_fallthru
        _
    $region6: #{tpu_custom_call.1} parent=1 // loop_footer
      %s22 = sadd.s32 1, %s18
    $region7: #{tpu_custom_call.1} parent=1 // loop_footer_branch
      %17 = sbr.rel target = $region3
    $region8: #{tpu_custom_call.1} parent=1 // loop_exit
      _
    %374 = vsyncpa [#allocation3], 1
    %s375 = scalar_lea.sflag [#allocation3], 1
    %376 = vsyncpa %s375, 1
    %377 = vsyncpa [#allocation6], 1
    %s378 = scalar_lea.sflag [#allocation6], 1
    %379 = vsyncpa %s378, 1
    %380 = vsyncpa [#allocation4], 1
    %s381 = scalar_lea.sflag [#allocation4], 1
    %382 = vsyncpa %s381, 1

</llo_original>
